<compile_context>
chip_gen: v7x
topology: tpu7x:2x2x1
jax: 0.10.0
libtpu: 0.0.40
codegen_flags: <defaults>
</compile_context>

<pallas_src>
import jax
import jax.numpy as jnp
from jax.experimental import pallas as pl
from jax.experimental.pallas import tpu as pltpu


def _round_up(v, m):
    return ((v + m - 1) // m) * m


def _vmem_capacity_bytes():
    """Generation-aware VMEM size (v5e/v6e: 128 MiB, v7x: 64 MiB per TC)."""
    try:
        cap = int(pltpu.get_tpu_info().vmem_capacity_bytes)
        if cap > 0:
            return cap
    except Exception:
        pass
    return 64 * 1024 * 1024  # conservative fallback = v7x per-core VMEM


def _l2norm_kernel(x_ref, o_ref):
    # x_ref: (b_blk, C, t_hw) VMEM tile; o_ref: (b_blk, t_hw)
    x = x_ref[...].astype(jnp.float32)          # accumulate in f32
    sq_sum = jnp.sum(x * x, axis=1)             # sublane reduce over channels (XLU)
    o_ref[...] = jnp.sqrt(sq_sum).astype(o_ref.dtype)


def _choose_tiles(B, C, HW, itemsize, vmem_cap):
    # 8 batch rows per step -> full-sublane (unmasked) output stores when B >= 8.
    b_blk = 8 if B >= 8 else B
    hw_lane = _round_up(HW, 128)
    # Size the HW tile by bytes: ~1-4 MiB per input buffer so per-grid-step
    # overhead (~0.35us) is amortized and DMAs stay long; generation-aware cap.
    per_buf_target = max(1 << 20, min(4 << 20, vmem_cap // 16))
    t_hw = per_buf_target // max(1, b_blk * C * itemsize)
    t_hw = (t_hw // 128) * 128
    t_hw = max(128, min(t_hw, 32768, hw_lane))
    # Megacore guard (v7x: 2 TensorCores/chip): keep >= 2 grid programs if possible.
    while (pl.cdiv(B, b_blk) * pl.cdiv(HW, t_hw)) < 2 and t_hw > 128:
        t_hw = max(128, _round_up(t_hw // 2, 128))
    return b_blk, t_hw


def integral_loss_forward(s, x):
    """Pallas equivalent of TestIntegralLoss.forward(s, x) = x.norm(dim=1, p=2)."""
    del s  # unused in the reference module
    B, C, H, W = x.shape
    HW = H * W
    itemsize = jnp.dtype(x.dtype).itemsize
    # Free (no-copy) view of contiguous NCHW data; no jnp.pad -> no extra HBM pass.
    x_flat = x.reshape(B, C, HW)

    vmem_cap = _vmem_capacity_bytes()
    b_blk, t_hw = _choose_tiles(B, C, HW, itemsize, vmem_cap)
    grid = (pl.cdiv(B, b_blk), pl.cdiv(HW, t_hw))

    in_blk_bytes = b_blk * C * t_hw * itemsize
    out_blk_bytes = b_blk * t_hw * itemsize
    # 3-deep input buffering + double-buffered output + f32 compute temps.
    vmem_need = 3 * in_blk_bytes + 2 * out_blk_bytes + 2 * b_blk * C * t_hw * 4
    vmem_limit = int(min((vmem_cap * 3) // 4, max(32 << 20, 2 * vmem_need)))

    cost = pl.CostEstimate(
        flops=2 * B * C * HW,
        transcendentals=B * HW,
        bytes_accessed=B * C * HW * itemsize + B * HW * itemsize,
    )

    def build(buffered):
        if buffered:
            in_spec = pl.BlockSpec((b_blk, C, t_hw), lambda b, t: (b, 0, t),
                                   pipeline_mode=pl.Buffered(3))
        else:
            in_spec = pl.BlockSpec((b_blk, C, t_hw), lambda b, t: (b, 0, t))
        return pl.pallas_call(
            _l2norm_kernel,
            out_shape=jax.ShapeDtypeStruct((B, HW), x.dtype),
            grid_spec=pltpu.PrefetchScalarGridSpec(
                num_scalar_prefetch=0,
                grid=grid,
                in_specs=[in_spec],
                out_specs=pl.BlockSpec((b_blk, t_hw), lambda b, t: (b, t)),
            ),
            compiler_params=pltpu.CompilerParams(
                dimension_semantics=("parallel", "parallel"),
                vmem_limit_bytes=vmem_limit,
            ),
            cost_estimate=cost,
        )

    try:
        out_flat = build(buffered=True)(x_flat)
    except Exception:
        # Older Pallas without pipeline_mode=Buffered: fall back to default 2-deep.
        out_flat = build(buffered=False)(x_flat)

    return out_flat.reshape(B, H, W)


if __name__ == "__main__":
    key = jax.random.PRNGKey(0)
    k_s, k_x = jax.random.split(key)

    B, C, H, W = 2, 4, 16, 16
    # `s` is an arbitrary extra input ignored by the module's forward.
    s = jax.random.normal(k_s, (B, C, H, W), dtype=jnp.float32)
    x = jax.random.normal(k_x, (B, C, H, W), dtype=jnp.float32)

    out = jax.block_until_ready(integral_loss_forward(s, x))

    # Correctness check against plain-JAX reference of torch's x.norm(dim=1, p=2)
    ref = jnp.sqrt(jnp.sum(x.astype(jnp.float32) ** 2, axis=1))
    assert out.shape == (B, H, W), out.shape
    assert jnp.allclose(out, ref, atol=1e-5, rtol=1e-5)

    print("KERNEL_OK")
</pallas_src>

<mosaic_0001>
module attributes {stable_mosaic.version = 11 : i64} {
  func.func @_l2norm_kernel(%arg0: i32, %arg1: i32, %arg2: memref<2x4x128xf32, #tpu.memory_space<vmem>>, %arg3: memref<2x128xf32, #tpu.memory_space<vmem>>) attributes {dimension_semantics = [#tpu.dimension_semantics<parallel>, #tpu.dimension_semantics<parallel>], iteration_bounds = array<i64: 1, 2>, scalar_prefetch = 0 : i64, scratch_operands = 0 : i64, tpu.core_type = #tpu.core_type<tc>, window_params = [{transform_indices = @transform_0, window_bounds = array<i64: 2, 4, 128>}, {transform_indices = @transform_1, window_bounds = array<i64: 2, 128>}]} {
    %c0 = arith.constant 0 : index
    %c0_0 = arith.constant 0 : index
    %c0_1 = arith.constant 0 : index
    %0 = vector.load %arg2[%c0, %c0_0, %c0_1] : memref<2x4x128xf32, #tpu.memory_space<vmem>>, vector<2x4x128xf32>
    %1 = arith.mulf %0, %0 : vector<2x4x128xf32>
    %cst = arith.constant dense<0.000000e+00> : vector<2x128xf32>
    %2 = vector.multi_reduction <add>, %1, %cst [1] : vector<2x4x128xf32> to vector<2x128xf32>
    %3 = math.sqrt %2 : vector<2x128xf32>
    %c0_2 = arith.constant 0 : index
    %c0_3 = arith.constant 0 : index
    %4 = vector.load %arg3[%c0_2, %c0_3] : memref<2x128xf32, #tpu.memory_space<vmem>>, vector<2x128xf32>
    tpu.vector_store %arg3[%c0_2, %c0_3], %3 {strides = array<i32>} : memref<2x128xf32, #tpu.memory_space<vmem>>, vector<2x128xf32>,
    return
  }
  func.func @transform_0(%arg0: i32, %arg1: i32) -> (i32, i32, i32) {
    %c0_i32 = arith.constant 0 : i32
    %c0_i32_0 = arith.constant 0 : i32
    return %arg0, %c0_i32, %arg1 : i32, i32, i32
  }
  func.func @transform_1(%arg0: i32, %arg1: i32) -> (i32, i32) {
    %c0_i32 = arith.constant 0 : i32
    return %arg0, %arg1 : i32, i32
  }
}

</mosaic_0001>

<llo_original>
// kernel: tpu_custom_call.1
$region0: #{tpu_custom_call.1}
  #allocation0 [shape = 'u32[]', space=smem, size = 0x4, offset = 0x4, fixed_abs, tag = 'smem constant byte address 0x4 - core index']
  #allocation1 [shape = 'u32[144,128]{1,0:T(1,128)}', space=vmem, size = 0x12000, scoped, tag = 'internal scratch']
  %s0 = inlined_call_operand.hbm [shape: f32[2,4,256], index: 0, kind: input, shape index: {}]
  %s1 = inlined_call_operand.hbm [shape: f32[2,256], index: 1, kind: output, shape index: {}]
  %s2 = sld [smem:[#allocation0]]
  $region41: #{tpu_custom_call.1} parent=0
    _
  %s4 = ssub.s32 1, %s2
  %s5 = scalar_select 0, %s4, %s2
  $region1: #{tpu_custom_call.1} parent=0
    #allocation2 [shape = 'u8[8192]{0}', space=vmem, size = 0x2000, scoped, tag = 'input window, operand 0']
    #allocation3 [shape = 's32[2]{0}', space=sflag, size = 0x8, scoped, tag = 'scoped memory for tpu_custom_call.1']
    #allocation4 [shape = 's32[2]{0}', space=sflag, size = 0x8, scoped, tag = 'scoped memory for tpu_custom_call.1']
    #allocation5 [shape = 'u8[2048]{0}', space=vmem, size = 0x800, scoped, tag = 'output window, operand 0']
    %6 = vsyncpa [#allocation3], 0
    %s7 = scalar_lea.sflag [#allocation3], 1
    %8 = vsyncpa %s7, 0
    %9 = vsyncpa [#allocation4], 0
    %s10 = scalar_lea.sflag [#allocation4], 1
    %11 = vsyncpa %s10, 0
    loop: start=0, step=1, limit=4
    $region2: #{tpu_custom_call.1} parent=1 // loop_pre_header
      _
    $region3: #{tpu_custom_call.1} parent=1 // loop_header
      %s13 = sphi 0, %s17
      %p14 = scmp.ge.s32.totalorder %s13, 4
      %s20 = sphi 0, %s32
      %s21 = sphi 0, %s28
      %s22 = sphi 0, %s20
      %s23 = sphi 0, %s21
      %s24 = sphi 0, %s22
      %s25 = sphi 0, %s23
      %s37 = sphi 0, %s39
      %s40 = sphi 0, %s37
      %s41 = sphi 0, %s40
      %s57 = sphi 0, %s41
      %s65 = sphi 0, %s67
      %s68 = sphi 0, %s65
      %s69 = sphi 0, %s68
      %s85 = sphi 0, %s69
    $region4: #{tpu_custom_call.1} parent=1 // loop_header_branch
      %16 = sbr.rel (%p14) target = $region8
    $region5: #{tpu_custom_call.1} parent=1 // loop_body
      %s18 = ssub.s32 %s13, 1
      %s19 = ssub.s32 %s13, 2
      %s26 = sadd.s32 1, %s21
      %p27 = scmp.ge.s32.totalorder %s26, 2
      %s28 = scalar_select %p27, 0, %s26
      %s29 = sadd.s32 1, %s20
      %s30 = scalar_select %p27, %s29, %s20
      %p31 = scmp.ge.s32.totalorder %s30, 1
      %s32 = scalar_select %p31, 0, %s30
      %s33 = ssub.s32 %s20, %s32
      %s34 = ssub.s32 %s21, %s28
      %s35 = sor.u32 %s33, %s34
      %p36 = scmp.eq.s32.totalorder %s35, 0
      %s38 = sadd.s32 %s37, 1
      %s39 = scalar_select %p36, %s37, %s38
      %p42 = pneg %p36
      %p43 = scmp.eq.s32.totalorder %s13, 1
      %p44 = por %p42, %p43
      %p45 = scmp.ne.s32.totalorder %s37, %s40
      %p46 = scmp.eq.s32.totalorder %s13, 0
      %p47 = por %p45, %p46
      %p48 = scmp.ne.s32.totalorder %s37, %s40
      %p49 = scmp.eq.s32.totalorder %s18, 1
      %p50 = por %p48, %p49
      %p51 = scmp.ne.s32.totalorder %s40, %s41
      %p52 = scmp.eq.s32.totalorder %s18, 0
      %p53 = por %p51, %p52
      %p54 = scmp.ne.s32.totalorder %s40, %s41
      %p55 = scmp.eq.s32.totalorder %s19, 1
      %p56 = por %p54, %p55
      %p58 = scmp.ne.s32.totalorder %s41, %s57
      %p59 = scmp.eq.s32.totalorder %s19, 0
      %p60 = por %p58, %p59
      %s61 = ssub.s32 %s20, %s32
      %s62 = ssub.s32 %s21, %s28
      %s63 = sor.u32 %s61, %s62
      %p64 = scmp.eq.s32.totalorder %s63, 0
      %s66 = sadd.s32 %s65, 1
      %s67 = scalar_select %p64, %s65, %s66
      %p70 = pneg %p64
      %p71 = scmp.eq.s32.totalorder %s13, 1
      %p72 = por %p70, %p71
      %p73 = scmp.ne.s32.totalorder %s65, %s68
      %p74 = scmp.eq.s32.totalorder %s13, 0
      %p75 = por %p73, %p74
      %p76 = scmp.ne.s32.totalorder %s65, %s68
      %p77 = scmp.eq.s32.totalorder %s18, 1
      %p78 = por %p76, %p77
      %p79 = scmp.ne.s32.totalorder %s68, %s69
      %p80 = scmp.eq.s32.totalorder %s18, 0
      %p81 = por %p79, %p80
      %p82 = scmp.ne.s32.totalorder %s68, %s69
      %p83 = scmp.eq.s32.totalorder %s19, 1
      %p84 = por %p82, %p83
      %p86 = scmp.ne.s32.totalorder %s69, %s85
      %p87 = scmp.eq.s32.totalorder %s19, 0
      %p88 = por %p86, %p87
      %p89 = scmp.le.s32.totalorder 1, %s13
      %p90 = scmp.lt.s32.totalorder %s13, 3
      %p91 = pnand %p89, %p90
      %p92 = pneg %p91
      // Predicated region
      $region9: #{tpu_custom_call.1} parent=5 // pred_check
        _
      $region10: #{tpu_custom_call.1} parent=5 // pred_check_branch
        %94 = sbr.rel (%p91) target = $region12
      $region11: #{tpu_custom_call.1} parent=5 // pred_region
        %s95 = ssub.s32 %s13, 1
      $region12: #{tpu_custom_call.1} parent=5 // pred_fallthru
        _
      %p96 = scmp.lt.s32.totalorder %s13, 2
      // Predicated region
      $region13: #{tpu_custom_call.1} parent=5 // pred_check
        %p97 = pneg %p96
      $region14: #{tpu_custom_call.1} parent=5 // pred_check_branch
        %99 = sbr.rel (%p97) target = $region16
      $region15: #{tpu_custom_call.1} parent=5 // pred_region
        // Predicated region
        $region17: #{tpu_custom_call.1} parent=15 // pred_check
          %p100 = pneg %p47
        $region18: #{tpu_custom_call.1} parent=15 // pred_check_branch
          %102 = sbr.rel (%p100) target = $region20
        $region19: #{tpu_custom_call.1} parent=15 // pred_region
          %s103 = sand.u32 %s37, 1
          %s104 = scalar_lea.sflag [#allocation3], %s103
          %s105 = sand.u32 %s37, 1
          %s106 = smul.addr %s105, 8
          %s107 = scalar_lea.vmem [#allocation2], %s106
          %s108 = smul.u32 2, %s20
          %s110 = ssub.s32 128, 128
          %111 = vsyncadd %s104, %s110
          %s112 = smul.addr %s108, 2
          %s113 = sadd.s32 %s21, %s112
          %s114 = smul.addr %s113, 64
          %s115 = scalar_lea.hbm %s0, %s114
          %s116 = sshll.u32 %s107, 4
          %s117 = int_to_ptr.vmem [resolvable:$true] %s116
          %122 = dma.hbm_to_vmem [thread:$0]  %s115, 128, %s117, %s104, 128, 64, 4
        $region20: #{tpu_custom_call.1} parent=15 // pred_fallthru
          _
      $region16: #{tpu_custom_call.1} parent=5 // pred_fallthru
        _
      %p123 = scmp.le.s32.totalorder 1, %s13
      %p124 = scmp.lt.s32.totalorder %s13, 3
      %p125 = pnand %p123, %p124
      %p126 = pneg %p125
      // Predicated region
      $region21: #{tpu_custom_call.1} parent=5 // pred_check
        _
      $region22: #{tpu_custom_call.1} parent=5 // pred_check_branch
        %128 = sbr.rel (%p125) target = $region24
      $region23: #{tpu_custom_call.1} parent=5 // pred_region
        %s129 = ssub.s32 %s13, 1
        %s130 = sand.u32 %s40, 1
        %s131 = scalar_lea.sflag [#allocation3], %s130
        %s132 = sand.u32 %s40, 1
        %s133 = smul.addr %s132, 8
        %s134 = scalar_lea.vmem [#allocation2], %s133
        // Predicated region
        $region25: #{tpu_custom_call.1} parent=23 // pred_check
          %p135 = pneg %p53
        $region26: #{tpu_custom_call.1} parent=23 // pred_check_branch
          %137 = sbr.rel (%p135) target = $region28
        $region27: #{tpu_custom_call.1} parent=23 // pred_region
          %138 = dma.done %s131, 128
        $region28: #{tpu_custom_call.1} parent=23 // pred_fallthru
          _
        %s139 = sand.u32 %s40, 1
        %s140 = scalar_lea.sflag [#allocation3], %s139
        %s141 = sand.u32 %s40, 1
        %s142 = smul.addr %s141, 8
        %s143 = scalar_lea.vmem [#allocation2], %s142
        %p144 = pneg %p53
        %p145 = pneg %p50
        %p146 = pneg %p81
        %p147 = pneg %p78
        %s148 = sand.u32 %s68, 1
        %s149 = scalar_lea.sflag [#allocation4], %s148
        %s150 = sand.u32 %s68, 1
        %s151 = smul.addr %s150, 2
        %s152 = scalar_lea.vmem [#allocation5], %s151
        %s153 = smul.u32 2, %s22
        %v154 = vld [vmem:[%s134] sm:$0xf]
        %v155 = vld [vmem:[%s134 + $0x4] sm:$0xf]
        %v156 = vmul.f32 %v154, %v154
        %v157 = vmul.f32 %v155, %v155
        %vm158 = vcmask 1043456
        %v159 = vsel %vm158, %v156, 0.0
        %v160 = vrot.slane %v159, 4
        %v161 = vadd.f32 %v159, %v160
        %v162 = vrot.slane %v161, 2
        %v163 = vadd.f32 %v161, %v162
        %v164 = vrot.slane %v163, 1
        %v165 = vadd.f32 %v163, %v164
        %v166 = vsel %vm158, %v157, 0.0
        %v167 = vrot.slane %v166, 4
        %v168 = vadd.f32 %v166, %v167
        %v169 = vrot.slane %v168, 2
        %v170 = vadd.f32 %v168, %v169
        %v171 = vrot.slane %v170, 1
        %v172 = vadd.f32 %v170, %v171
        %v173 = vrsqrt.pop %v165
        %v174 = vmul.f32 %v165, %v173
        %vm175 = vcmp.eq.f32.partialorder %v165, inf
        %v176 = vsel %vm175, %v165, %v174
        %vm177 = vcmp.eq.f32.partialorder %v165, 0.0
        %v178 = vand.u32 %v165, 2147483648
        %v179 = vsel %vm177, %v178, %v176
        %v180 = vrsqrt.pop %v172
        %v181 = vmul.f32 %v172, %v180
        %vm182 = vcmp.eq.f32.partialorder %v172, inf
        %v183 = vsel %vm182, %v172, %v181
        %vm184 = vcmp.eq.f32.partialorder %v172, 0.0
        %v185 = vand.u32 %v172, 2147483648
        %v186 = vsel %vm184, %v185, %v183
        %vm189 = vcmask 1041409
        %v190 = vsel %vm189, %v186, %v179
        %192 = vst [vmem:[%s152] sm:$0x3] %v190
        %s193 = sand.u32 %s68, 1
        %s194 = scalar_lea.sflag [#allocation4], %s193
        %s195 = sand.u32 %s68, 1
        %s196 = smul.addr %s195, 2
        %s197 = scalar_lea.vmem [#allocation5], %s196
        // Predicated region
        $region29: #{tpu_custom_call.1} parent=23 // pred_check
          %p198 = pneg %p78
        $region30: #{tpu_custom_call.1} parent=23 // pred_check_branch
          %200 = sbr.rel (%p198) target = $region32
        $region31: #{tpu_custom_call.1} parent=23 // pred_region
          %s202 = ssub.s32 32, 32
          %203 = vsyncadd %s194, %s202
          %s204 = smul.addr %s22, 2
          %s205 = sadd.s32 %s23, %s204
          %s206 = smul.addr %s205, 32
          %s207 = scalar_lea.hbm %s1, %s206
          %s209 = sshll.u32 %s197, 4
          %s210 = int_to_ptr.vmem [resolvable:$true] %s209
          %212 = dma.vmem_to_hbm [thread:$0]  %s210, 32, %s207, %s194
        $region32: #{tpu_custom_call.1} parent=23 // pred_fallthru
          _
      $region24: #{tpu_custom_call.1} parent=5 // pred_fallthru
        _
      %p213 = scmp.le.s32.totalorder 2, %s13
      // Predicated region
      $region33: #{tpu_custom_call.1} parent=5 // pred_check
        %p214 = pneg %p213
      $region34: #{tpu_custom_call.1} parent=5 // pred_check_branch
        %216 = sbr.rel (%p214) target = $region36
      $region35: #{tpu_custom_call.1} parent=5 // pred_region
        %s217 = ssub.s32 %s13, 2
        // Predicated region
        $region37: #{tpu_custom_call.1} parent=35 // pred_check
          %p218 = pneg %p84
        $region38: #{tpu_custom_call.1} parent=35 // pred_check_branch
          %220 = sbr.rel (%p218) target = $region40
        $region39: #{tpu_custom_call.1} parent=35 // pred_region
          %s221 = sand.u32 %s69, 1
          %s222 = scalar_lea.sflag [#allocation4], %s221
          %s223 = sand.u32 %s69, 1
          %s224 = smul.addr %s223, 2
          %s225 = scalar_lea.vmem [#allocation5], %s224
          %226 = dma.done %s222, 32
        $region40: #{tpu_custom_call.1} parent=35 // pred_fallthru
          _
      $region36: #{tpu_custom_call.1} parent=5 // pred_fallthru
        _
    $region6: #{tpu_custom_call.1} parent=1 // loop_footer
      %s17 = sadd.s32 1, %s13
    $region7: #{tpu_custom_call.1} parent=1 // loop_footer_branch
      %12 = sbr.rel target = $region3
    $region8: #{tpu_custom_call.1} parent=1 // loop_exit
      _
    %227 = vsyncpa [#allocation3], 1
    %s228 = scalar_lea.sflag [#allocation3], 1
    %229 = vsyncpa %s228, 1
    %230 = vsyncpa [#allocation4], 1
    %s231 = scalar_lea.sflag [#allocation4], 1
    %232 = vsyncpa %s231, 1

</llo_original>
